<compile_context>
chip_gen: v5e
topology: v5e:2x2
jax: 0.10.0
libtpu: 0.0.40
codegen_flags: <defaults>
</compile_context>

<pallas_src>
import jax
import jax.numpy as jnp
from jax.experimental import pallas as pl
from jax.experimental.pallas import tpu as pltpu


# ------------------------------ Pallas kernel ------------------------------ #

def fused_conv_leaky_kernel(p_ref, w_ref, b_ref, o_ref):
    # p_ref: [K, TM]    K-major im2col patches (lane-dense along TM)
    # w_ref: [Cout, K]  folded conv1@conv2 weights (resident)
    # b_ref: [Cout, 1]  folded bias (resident)
    # o_ref: [Cout, TM]
    v = jnp.dot(w_ref[...], p_ref[...], preferred_element_type=jnp.float32)
    v = v + b_ref[...]                                   # lane-broadcast bias
    o_ref[...] = jnp.where(v > 0, v, v * jnp.float32(-0.025))


# ------------------------------- JAX wrapper -------------------------------- #

def _round_up(x, m):
    return (x + m - 1) // m * m


def model_forward(x_nchw, params):
    """x_nchw: [N, 64, H, W] float32 -> [N, 8, H2, W2] float32 (NCHW)."""
    w1, b1, w2, b2 = params          # w1:[32,64,3,3] b1:[32] w2:[8,32,1,1] b2:[8]
    N, Cin, H, W = x_nchw.shape
    KH = KW = 3
    PAD = 2
    S_EFF = 9                        # composed stride: conv1(3) * conv2(3)
    Cmid = w1.shape[0]
    Cout = w2.shape[0]
    K = KH * KW * Cin                # 576

    # ---- fold conv2 (1x1) into conv1: K-order is (kh, kw, cin) ----
    w2m = w2.reshape(Cout, Cmid)                                    # [8, 32]
    w_eff = jnp.einsum('oa,aikl->okli', w2m, w1).reshape(Cout, K)   # [8, 576]
    b_eff = (w2m @ b1 + b2).reshape(Cout, 1)                        # [8, 1]

    # composed output size == nested floors of the two convs
    H2 = (H + 2 * PAD - KH) // S_EFF + 1
    W2 = (W + 2 * PAD - KW) // S_EFF + 1
    M = N * H2 * W2

    # ---- composed-stride im2col via a single clamped+masked gather from the
    #      UNPADDED input (no full padded copy, only needed taps are read) ----
    rows = jnp.arange(KH)[:, None] + S_EFF * jnp.arange(H2)[None, :] - PAD  # [KH, H2]
    cols = jnp.arange(KW)[:, None] + S_EFF * jnp.arange(W2)[None, :] - PAD  # [KW, W2]
    valid_r = (rows >= 0) & (rows < H)
    valid_c = (cols >= 0) & (cols < W)
    rows_c = jnp.clip(rows, 0, H - 1)
    cols_c = jnp.clip(cols, 0, W - 1)

    # g[n, cin, kh, h2, kw, w2] = x[n, cin, rows_c[kh,h2], cols_c[kw,w2]]
    g = x_nchw[:, :, rows_c[:, :, None, None], cols_c[None, None, :, :]]
    mask = valid_r[:, :, None, None] & valid_c[None, None, :, :]     # [KH,H2,KW,W2]
    g = jnp.where(mask[None, None], g, jnp.float32(0))
    # [N,Cin,KH,H2,KW,W2] -> [KH,KW,Cin,N,H2,W2] -> [K, M]  (rows: kh,kw,cin)
    patches = g.transpose(2, 4, 1, 0, 3, 5).reshape(K, M)

    # ---- tile M (lane-aligned); keep >= 2 grid steps when possible so the
    #      "parallel" axis actually feeds both v7x TensorCores ----
    M128 = _round_up(M, 128)
    TM = min(2048, M128)
    if M128 // TM < 2 and TM > 128:
        TM = _round_up(M128 // 2, 128)
    M_pad = _round_up(M, TM)
    patches = jnp.pad(patches, ((0, 0), (0, M_pad - M)))

    out_flat = pl.pallas_call(
        fused_conv_leaky_kernel,
        out_shape=jax.ShapeDtypeStruct((Cout, M_pad), jnp.float32),
        grid_spec=pltpu.PrefetchScalarGridSpec(
            num_scalar_prefetch=0,
            grid=(M_pad // TM,),
            in_specs=[
                pl.BlockSpec((K, TM), lambda i: (0, i)),      # patches tile
                pl.BlockSpec((Cout, K), lambda i: (0, 0)),    # folded weights (resident)
                pl.BlockSpec((Cout, 1), lambda i: (0, 0)),    # folded bias (resident)
            ],
            out_specs=pl.BlockSpec((Cout, TM), lambda i: (0, i)),
        ),
        compiler_params=pltpu.CompilerParams(
            dimension_semantics=("parallel",),                # shard rows over TCs
            vmem_limit_bytes=32 * 1024 * 1024,                # safe on v5e/v6e/v7x
        ),
    )(patches, w_eff, b_eff)

    # [Cout, M] -> NCHW (tiny output transpose)
    out = out_flat[:, :M].reshape(Cout, N, H2, W2).transpose(1, 0, 2, 3)
    return out


def init_params(key):
    k1, k2, k3, k4 = jax.random.split(key, 4)
    w1 = jax.random.normal(k1, (32, 64, 3, 3), jnp.float32) * 0.05
    b1 = jax.random.normal(k2, (32,), jnp.float32) * 0.05
    w2 = jax.random.normal(k3, (8, 32, 1, 1), jnp.float32) * 0.05
    b2 = jax.random.normal(k4, (8,), jnp.float32) * 0.05
    return (w1, b1, w2, b2)


def _reference(x, params):
    """Pure-JAX reference matching the PyTorch module (two convs + leaky)."""
    w1, b1, w2, b2 = params
    dn = ('NCHW', 'OIHW', 'NCHW')
    v1 = jax.lax.conv_general_dilated(x, w1, (3, 3), ((2, 2), (2, 2)),
                                      dimension_numbers=dn) + b1[None, :, None, None]
    v2 = jax.lax.conv_general_dilated(v1, w2, (3, 3), ((0, 0), (0, 0)),
                                      dimension_numbers=dn) + b2[None, :, None, None]
    return jnp.where(v2 > 0, v2, v2 * jnp.float32(-0.025))


if __name__ == "__main__":
    key = jax.random.PRNGKey(0)
    kx, kp = jax.random.split(key)
    # N=2, Cin=64 (required by conv1), spatial 16x16
    x = jax.random.normal(kx, (2, 64, 16, 16), jnp.float32)
    params = init_params(kp)

    out = jax.jit(model_forward)(x, params)
    out = jax.block_until_ready(out)
    assert out.shape == (2, 8, 2, 2), out.shape

    # correctness check against the unfused pure-JAX reference
    ref = jax.block_until_ready(jax.jit(_reference)(x, params))
    assert jnp.allclose(out, ref, rtol=1e-4, atol=1e-4), float(jnp.max(jnp.abs(out - ref)))

    print("KERNEL_OK")
</pallas_src>

<mosaic_0001>
module attributes {stable_mosaic.version = 11 : i64} {
  func.func @fused_conv_leaky_kernel(%arg0: i32, %arg1: memref<576x128xf32, #tpu.memory_space<vmem>>, %arg2: memref<8x576xf32, #tpu.memory_space<vmem>>, %arg3: memref<8x1xf32, #tpu.memory_space<vmem>>, %arg4: memref<8x128xf32, #tpu.memory_space<vmem>>) attributes {dimension_semantics = [#tpu.dimension_semantics<parallel>], iteration_bounds = array<i64: 1>, scalar_prefetch = 0 : i64, scratch_operands = 0 : i64, tpu.core_type = #tpu.core_type<tc>, window_params = [{transform_indices = @transform_0, window_bounds = array<i64: 576, 128>}, {pipeline_mode = #tpu.pipeline_mode<synchronous>, transform_indices = @transform_1, window_bounds = array<i64: 8, 576>}, {pipeline_mode = #tpu.pipeline_mode<synchronous>, transform_indices = @transform_2, window_bounds = array<i64: 8, 1>}, {transform_indices = @transform_3, window_bounds = array<i64: 8, 128>}]} {
    %c0 = arith.constant 0 : index
    %c0_0 = arith.constant 0 : index
    %0 = vector.load %arg2[%c0, %c0_0] : memref<8x576xf32, #tpu.memory_space<vmem>>, vector<8x576xf32>
    %c0_1 = arith.constant 0 : index
    %c0_2 = arith.constant 0 : index
    %1 = vector.load %arg1[%c0_1, %c0_2] : memref<576x128xf32, #tpu.memory_space<vmem>>, vector<576x128xf32>
    %cst = arith.constant dense<0.000000e+00> : vector<8x128xf32>
    %2 = tpu.matmul %0, %1, %cst {dimension_numbers = #tpu.dot_dimension_numbers<[1], [0], [0], [1], [0, 0, 1, 1], [], []>} : vector<8x576xf32>, vector<576x128xf32>, vector<8x128xf32> -> vector<8x128xf32>
    %c0_3 = arith.constant 0 : index
    %c0_4 = arith.constant 0 : index
    %3 = vector.load %arg3[%c0_3, %c0_4] : memref<8x1xf32, #tpu.memory_space<vmem>>, vector<8x1xf32>
    %4 = vector.broadcast %3 : vector<8x1xf32> to vector<8x128xf32>
    %5 = arith.addf %2, %4 : vector<8x128xf32>
    %cst_5 = arith.constant 0.000000e+00 : f32
    %6 = vector.broadcast %cst_5 : f32 to vector<8x128xf32>
    %7 = arith.cmpf ogt, %5, %6 : vector<8x128xf32>
    %cst_6 = arith.constant -2.500000e-02 : f32
    %8 = vector.broadcast %cst_6 : f32 to vector<8x128xf32>
    %9 = arith.mulf %5, %8 : vector<8x128xf32>
    %10 = arith.select %7, %5, %9 : vector<8x128xi1>, vector<8x128xf32>
    %c0_7 = arith.constant 0 : index
    %c0_8 = arith.constant 0 : index
    %11 = vector.load %arg4[%c0_7, %c0_8] : memref<8x128xf32, #tpu.memory_space<vmem>>, vector<8x128xf32>
    tpu.vector_store %arg4[%c0_7, %c0_8], %10 {strides = array<i32>} : memref<8x128xf32, #tpu.memory_space<vmem>>, vector<8x128xf32>,
    return
  }
  func.func @transform_0(%arg0: i32) -> (i32, i32) {
    %c0_i32 = arith.constant 0 : i32
    %c0_i32_0 = arith.constant 0 : i32
    return %c0_i32, %arg0 : i32, i32
  }
  func.func @transform_1(%arg0: i32) -> (i32, i32) {
    %c0_i32 = arith.constant 0 : i32
    %c0_i32_0 = arith.constant 0 : i32
    %c0_i32_1 = arith.constant 0 : i32
    return %c0_i32, %c0_i32_0 : i32, i32
  }
  func.func @transform_2(%arg0: i32) -> (i32, i32) {
    %c0_i32 = arith.constant 0 : i32
    %c0_i32_0 = arith.constant 0 : i32
    %c0_i32_1 = arith.constant 0 : i32
    return %c0_i32, %c0_i32_0 : i32, i32
  }
  func.func @transform_3(%arg0: i32) -> (i32, i32) {
    %c0_i32 = arith.constant 0 : i32
    %c0_i32_0 = arith.constant 0 : i32
    return %c0_i32, %arg0 : i32, i32
  }
}

</mosaic_0001>

<llo_original>
// kernel: model_forward.1
$region0: #{model_forward.1}
  #allocation0 [shape = 'u32[]', space=smem, size = 0x4, offset = 0x4, fixed_abs, tag = 'smem constant byte address 0x4 - core index']
  #allocation1 [shape = 'u32[72,128]{1,0:T(1,128)}', space=vmem, size = 0x9000, scoped, tag = 'internal scratch']
  %s0 = inlined_call_operand.vmem [shape: f32[576,128], index: 0, kind: input, shape index: {}]
  %s1 = inlined_call_operand.vmem [shape: f32[8,576], index: 1, kind: input, shape index: {}]
  %s2 = inlined_call_operand.vmem [shape: f32[8,1], index: 2, kind: input, shape index: {}]
  %s3 = inlined_call_operand.vmem [shape: f32[8,128], index: 3, kind: output, shape index: {}]
  %s4 = sld [smem:[#allocation0]]
  $region22: #{model_forward.1} parent=0
    _
  %s6 = ssub.s32 1, %s4
  %s7 = scalar_select 0, %s6, %s4
  // Predicated region
  $region2: #{model_forward.1} parent=0 // pred_check
    _
  $region3: #{model_forward.1} parent=0 // pred_check_branch
    %9 = sbr.rel (0) target = $region5
  $region4: #{model_forward.1} parent=0 // pred_region
    _
  $region5: #{model_forward.1} parent=0 // pred_fallthru
    _
  // Predicated region
  $region6: #{model_forward.1} parent=0 // pred_check
    _
  $region7: #{model_forward.1} parent=0 // pred_check_branch
    %11 = sbr.rel (0) target = $region9
  $region8: #{model_forward.1} parent=0 // pred_region
    _
  $region9: #{model_forward.1} parent=0 // pred_fallthru
    _
  // Predicated region
  $region10: #{model_forward.1} parent=0 // pred_check
    _
  $region11: #{model_forward.1} parent=0 // pred_check_branch
    %13 = sbr.rel (0) target = $region13
  $region12: #{model_forward.1} parent=0 // pred_region
    _
  $region13: #{model_forward.1} parent=0 // pred_fallthru
    _
  %v14 = vld [vmem:[%s1] sm:$0xff]
  %v15 = vld [vmem:[%s1 + $0x8] sm:$0xff]
  %v16 = vld [vmem:[%s1 + $0x10] sm:$0xff]
  %v17 = vld [vmem:[%s1 + $0x18] sm:$0xff]
  %v18 = vld [vmem:[%s1 + $0x20] sm:$0xff]
  %v19 = vld [vmem:[%s0] sm:$0xff]
  %v20 = vld [vmem:[%s0 + $0x8] sm:$0xff]
  %v21 = vld [vmem:[%s0 + $0x10] sm:$0xff]
  %v22 = vld [vmem:[%s0 + $0x18] sm:$0xff]
  %v23 = vld [vmem:[%s0 + $0x20] sm:$0xff]
  %v24 = vld [vmem:[%s0 + $0x28] sm:$0xff]
  %v25 = vld [vmem:[%s0 + $0x30] sm:$0xff]
  %v26 = vld [vmem:[%s0 + $0x38] sm:$0xff]
  %v27 = vld [vmem:[%s0 + $0x40] sm:$0xff]
  %v28 = vld [vmem:[%s0 + $0x48] sm:$0xff]
  %v29 = vld [vmem:[%s0 + $0x50] sm:$0xff]
  %v30 = vld [vmem:[%s0 + $0x58] sm:$0xff]
  %v31 = vld [vmem:[%s0 + $0x60] sm:$0xff]
  %v32 = vld [vmem:[%s0 + $0x68] sm:$0xff]
  %v33 = vld [vmem:[%s0 + $0x70] sm:$0xff]
  %v34 = vld [vmem:[%s0 + $0x78] sm:$0xff]
  %v35 = vld [vmem:[%s0 + $0x80] sm:$0xff]
  %v36 = vld [vmem:[%s0 + $0x88] sm:$0xff]
  %v37 = vld [vmem:[%s0 + $0x90] sm:$0xff]
  %v38 = vld [vmem:[%s0 + $0x98] sm:$0xff]
  %v39 = vld [vmem:[%s0 + $0xa0] sm:$0xff]
  %v40 = vld [vmem:[%s0 + $0xa8] sm:$0xff]
  %v41 = vld [vmem:[%s0 + $0xb0] sm:$0xff]
  %v42 = vld [vmem:[%s0 + $0xb8] sm:$0xff]
  %v43 = vld [vmem:[%s0 + $0xc0] sm:$0xff]
  %v44 = vld [vmem:[%s0 + $0xc8] sm:$0xff]
  %v45 = vld [vmem:[%s0 + $0xd0] sm:$0xff]
  %v46 = vld [vmem:[%s0 + $0xd8] sm:$0xff]
  %v47 = vld [vmem:[%s0 + $0xe0] sm:$0xff]
  %v48 = vld [vmem:[%s0 + $0xe8] sm:$0xff]
  %v49 = vld [vmem:[%s0 + $0xf0] sm:$0xff]
  %v50 = vld [vmem:[%s0 + $0xf8] sm:$0xff]
  %v51 = vld [vmem:[%s0 + $0x100] sm:$0xff]
  %v52 = vld [vmem:[%s0 + $0x108] sm:$0xff]
  %v53 = vld [vmem:[%s0 + $0x110] sm:$0xff]
  %v54 = vld [vmem:[%s0 + $0x118] sm:$0xff]
  %v55 = vld [vmem:[%s0 + $0x120] sm:$0xff]
  %v56 = vld [vmem:[%s0 + $0x128] sm:$0xff]
  %v57 = vld [vmem:[%s0 + $0x130] sm:$0xff]
  %v58 = vld [vmem:[%s0 + $0x138] sm:$0xff]
  %v59 = vld [vmem:[%s0 + $0x140] sm:$0xff]
  %v60 = vld [vmem:[%s0 + $0x148] sm:$0xff]
  %v61 = vld [vmem:[%s0 + $0x150] sm:$0xff]
  %v62 = vld [vmem:[%s0 + $0x158] sm:$0xff]
  %v63 = vld [vmem:[%s0 + $0x160] sm:$0xff]
  %v64 = vld [vmem:[%s0 + $0x168] sm:$0xff]
  %v65 = vld [vmem:[%s0 + $0x170] sm:$0xff]
  %v66 = vld [vmem:[%s0 + $0x178] sm:$0xff]
  %v67 = vld [vmem:[%s0 + $0x180] sm:$0xff]
  %v68 = vld [vmem:[%s0 + $0x188] sm:$0xff]
  %v69 = vld [vmem:[%s0 + $0x190] sm:$0xff]
  %v70 = vld [vmem:[%s0 + $0x198] sm:$0xff]
  %v71 = vld [vmem:[%s0 + $0x1a0] sm:$0xff]
  %v72 = vld [vmem:[%s0 + $0x1a8] sm:$0xff]
  %v73 = vld [vmem:[%s0 + $0x1b0] sm:$0xff]
  %v74 = vld [vmem:[%s0 + $0x1b8] sm:$0xff]
  %v75 = vld [vmem:[%s0 + $0x1c0] sm:$0xff]
  %v76 = vld [vmem:[%s0 + $0x1c8] sm:$0xff]
  %v77 = vld [vmem:[%s0 + $0x1d0] sm:$0xff]
  %v78 = vld [vmem:[%s0 + $0x1d8] sm:$0xff]
  %v79 = vld [vmem:[%s0 + $0x1e0] sm:$0xff]
  %v80 = vld [vmem:[%s0 + $0x1e8] sm:$0xff]
  %v81 = vld [vmem:[%s0 + $0x1f0] sm:$0xff]
  %v82 = vld [vmem:[%s0 + $0x1f8] sm:$0xff]
  %v83 = vld [vmem:[%s0 + $0x200] sm:$0xff]
  %v84 = vld [vmem:[%s0 + $0x208] sm:$0xff]
  %v85 = vld [vmem:[%s0 + $0x210] sm:$0xff]
  %v86 = vld [vmem:[%s0 + $0x218] sm:$0xff]
  %v87 = vld [vmem:[%s0 + $0x220] sm:$0xff]
  %v88 = vld [vmem:[%s0 + $0x228] sm:$0xff]
  %v89 = vld [vmem:[%s0 + $0x230] sm:$0xff]
  %v90 = vld [vmem:[%s0 + $0x238] sm:$0xff]
  %v91 = vld [vmem:[%s2] sm:$0xff]
  %93 = vset.pattern.permute.xlu0 0
  %94 = vperm.xlu0 %93, %v91
  %v95 = vpop.permute.xlu0 %94
  %vm97 = vcmask 523264
  %v99 = vsel %vm97, %v18, 0
  %101 = vmatpush.msra.mxu0 %v34
  %102 = vmatpush.msra.mxu0 %v33
  %103 = vmatpush.msra.mxu0 %v32
  %104 = vmatpush.msra.mxu0 %v31
  %105 = vmatpush.msra.mxu0 %v30
  %106 = vmatpush.msra.mxu0 %v29
  %107 = vmatpush.msra.mxu0 %v28
  %108 = vmatpush.msra.mxu0 %v27
  %109 = vmatpush.msra.mxu0 %v26
  %110 = vmatpush.msra.mxu0 %v25
  %111 = vmatpush.msra.mxu0 %v24
  %112 = vmatpush.msra.mxu0 %v23
  %113 = vmatpush.msra.mxu0 %v22
  %114 = vmatpush.msra.mxu0 %v21
  %115 = vmatpush.msra.mxu0 %v20
  %116 = vmatpush.msra.mxu0 %v19
  %117 = vmatmul.f32.gmra.mxu0 %v14
  %v118 = vpop.f32.mrf.mxu0
  %v119 = vadd.f32 %v95, %v118
  %120 = vdwg.mxu0
  %121 = vmatpush.msra.mxu0 %v50
  %122 = vmatpush.msra.mxu0 %v49
  %123 = vmatpush.msra.mxu0 %v48
  %124 = vmatpush.msra.mxu0 %v47
  %125 = vmatpush.msra.mxu0 %v46
  %126 = vmatpush.msra.mxu0 %v45
  %127 = vmatpush.msra.mxu0 %v44
  %128 = vmatpush.msra.mxu0 %v43
  %129 = vmatpush.msra.mxu0 %v42
  %130 = vmatpush.msra.mxu0 %v41
  %131 = vmatpush.msra.mxu0 %v40
  %132 = vmatpush.msra.mxu0 %v39
  %133 = vmatpush.msra.mxu0 %v38
  %134 = vmatpush.msra.mxu0 %v37
  %135 = vmatpush.msra.mxu0 %v36
  %136 = vmatpush.msra.mxu0 %v35
  %137 = vmatmul.f32.gmra.mxu0 %v15
  %v138 = vpop.f32.mrf.mxu0
  %v139 = vadd.f32 %v119, %v138
  %140 = vdwg.mxu0
  %141 = vmatpush.msra.mxu0 %v66
  %142 = vmatpush.msra.mxu0 %v65
  %143 = vmatpush.msra.mxu0 %v64
  %144 = vmatpush.msra.mxu0 %v63
  %145 = vmatpush.msra.mxu0 %v62
  %146 = vmatpush.msra.mxu0 %v61
  %147 = vmatpush.msra.mxu0 %v60
  %148 = vmatpush.msra.mxu0 %v59
  %149 = vmatpush.msra.mxu0 %v58
  %150 = vmatpush.msra.mxu0 %v57
  %151 = vmatpush.msra.mxu0 %v56
  %152 = vmatpush.msra.mxu0 %v55
  %153 = vmatpush.msra.mxu0 %v54
  %154 = vmatpush.msra.mxu0 %v53
  %155 = vmatpush.msra.mxu0 %v52
  %156 = vmatpush.msra.mxu0 %v51
  %157 = vmatmul.f32.gmra.mxu0 %v16
  %v158 = vpop.f32.mrf.mxu0
  %v159 = vadd.f32 %v139, %v158
  %160 = vdwg.mxu0
  %161 = vmatpush.msra.mxu0 %v82
  %162 = vmatpush.msra.mxu0 %v81
  %163 = vmatpush.msra.mxu0 %v80
  %164 = vmatpush.msra.mxu0 %v79
  %165 = vmatpush.msra.mxu0 %v78
  %166 = vmatpush.msra.mxu0 %v77
  %167 = vmatpush.msra.mxu0 %v76
  %168 = vmatpush.msra.mxu0 %v75
  %169 = vmatpush.msra.mxu0 %v74
  %170 = vmatpush.msra.mxu0 %v73
  %171 = vmatpush.msra.mxu0 %v72
  %172 = vmatpush.msra.mxu0 %v71
  %173 = vmatpush.msra.mxu0 %v70
  %174 = vmatpush.msra.mxu0 %v69
  %175 = vmatpush.msra.mxu0 %v68
  %176 = vmatpush.msra.mxu0 %v67
  %177 = vmatmul.f32.gmra.mxu0 %v17
  %v178 = vpop.f32.mrf.mxu0
  %v179 = vadd.f32 %v159, %v178
  %180 = vdwg.mxu0
  %181 = vmatpush.msra.mxu0 0.0
  %182 = vmatpush.msra.mxu0 0.0
  %183 = vmatpush.msra.mxu0 0.0
  %184 = vmatpush.msra.mxu0 0.0
  %185 = vmatpush.msra.mxu0 0.0
  %186 = vmatpush.msra.mxu0 0.0
  %187 = vmatpush.msra.mxu0 0.0
  %188 = vmatpush.msra.mxu0 0.0
  %189 = vmatpush.msra.mxu0 %v90
  %190 = vmatpush.msra.mxu0 %v89
  %191 = vmatpush.msra.mxu0 %v88
  %192 = vmatpush.msra.mxu0 %v87
  %193 = vmatpush.msra.mxu0 %v86
  %194 = vmatpush.msra.mxu0 %v85
  %195 = vmatpush.msra.mxu0 %v84
  %196 = vmatpush.msra.mxu0 %v83
  %197 = vmatmul.f32.gmra.mxu0 %v99
  %v198 = vpop.f32.mrf.mxu0
  %v199 = vadd.f32 %v179, %v198
  %200 = vdwg.mxu0
  %vm201 = vcmp.gt.f32.partialorder %v199, 0.0
  %v202 = vmul.f32 %v199, -0.025
  %v203 = vsel %vm201, %v199, %v202
  %204 = vst [vmem:[%s3] sm:$0xff] %v203
  // Predicated region
  $region14: #{model_forward.1} parent=0 // pred_check
    _
  $region15: #{model_forward.1} parent=0 // pred_check_branch
    %206 = sbr.rel (0) target = $region17
  $region16: #{model_forward.1} parent=0 // pred_region
    _
  $region17: #{model_forward.1} parent=0 // pred_fallthru
    _
  // Predicated region
  $region18: #{model_forward.1} parent=0 // pred_check
    _
  $region19: #{model_forward.1} parent=0 // pred_check_branch
    %208 = sbr.rel (0) target = $region21
  $region20: #{model_forward.1} parent=0 // pred_region
    _
  $region21: #{model_forward.1} parent=0 // pred_fallthru
    _

</llo_original>
